<compile_context>
chip_gen: v6e
topology: v6e:2x2x1
jax: 0.10.0
libtpu: 0.0.40
codegen_flags: <defaults>
</compile_context>

<pallas_src>
import functools

import jax
import jax.numpy as jnp
from jax import lax
from jax.experimental import pallas as pl
from jax.experimental.pallas import tpu as pltpu


def _convlstm_kernel(x_ref, w_ref, b_ref, c_ref, h_out_ref, c_out_ref, *, Ch):
    """One batch element per grid step.

    x_ref  : (1, K*K*Cc, H*W)  bf16 im2col columns (contraction on sublanes)
    w_ref  : (4*Ch, K*K*Cc)    bf16 gate weights, gate order [i, f, o, g]
    b_ref  : (4*Ch, 1)         f32 bias (broadcast over lanes)
    c_ref  : (1, Ch, H*W)      f32 current cell state
    h_out_ref / c_out_ref : (1, Ch, H*W) f32
    """
    # Single MXU matmul: (4*Ch, KKC) x (KKC, M) -> (4*Ch, M), f32 accumulation.
    gates = jnp.dot(w_ref[...], x_ref[0],
                    preferred_element_type=jnp.float32)
    gates = gates + b_ref[...]                      # (4*Ch, 1) lane broadcast

    # Gate slices are sublane slices at offsets 0/Ch/2Ch/3Ch (multiples of 8)
    # -> free views; every slab is fully lane-dense (H*W lanes).
    i_g = jax.nn.sigmoid(gates[0 * Ch:1 * Ch])
    f_g = jax.nn.sigmoid(gates[1 * Ch:2 * Ch])
    o_g = jax.nn.sigmoid(gates[2 * Ch:3 * Ch])
    g_g = jnp.tanh(gates[3 * Ch:4 * Ch])

    c_next = f_g * c_ref[0] + i_g * g_g             # (Ch, H*W) f32
    h_out_ref[0] = o_g * jnp.tanh(c_next)           # full-slab, unmasked store
    c_out_ref[0] = c_next


def _conv_lstm_cell_impl(x_nchw, h_nchw, c_nchw, weight_oihw, bias,
                         kernel_size):
    """Matches ConvLSTMCell.forward: returns (h_next, c_next) in NCHW."""
    K = kernel_size
    assert K % 2 == 1, (
        "kernel_size must be odd: PyTorch padding=K//2 only preserves the "
        "spatial size for odd kernels.")

    x = x_nchw.astype(jnp.float32)
    h = h_nchw.astype(jnp.float32)
    c = c_nchw.astype(jnp.float32)
    B, Cin, H, W = x.shape
    Ch = h.shape[1]
    p = K // 2
    Cc = Cin + Ch
    KKC = K * K * Cc
    M = H * W

    # --- wrapper glue (fused by jit; no transposes anywhere) -------------
    # Build the im2col column tensor directly from x and h (no materialized
    # channel concat): channel ordering per tap is [x-channels, h-channels],
    # taps ordered (dy outer, dx inner) to match the weight reshape below.
    xp = jnp.pad(x, ((0, 0), (0, 0), (p, p), (p, p)))
    hp = jnp.pad(h, ((0, 0), (0, 0), (p, p), (p, p)))
    patches = []
    for dy in range(K):
        for dx in range(K):
            patches.append(xp[:, :, dy:dy + H, dx:dx + W])
            patches.append(hp[:, :, dy:dy + H, dx:dx + W])
    x_col = jnp.concatenate(patches, axis=1)              # (B, KKC, H, W)
    x_col = x_col.reshape(B, KKC, M).astype(jnp.bfloat16)

    # weight (4Ch, Cc, K, K) -> (4Ch, dy, dx, c) -> (4Ch, KKC), bf16 for MXU.
    w2 = jnp.transpose(weight_oihw.astype(jnp.float32), (0, 2, 3, 1))
    w2 = w2.reshape(4 * Ch, KKC).astype(jnp.bfloat16)

    b2 = bias.astype(jnp.float32).reshape(4 * Ch, 1)
    c_flat = c.reshape(B, Ch, M)                          # NCHW flatten = free

    kernel = functools.partial(_convlstm_kernel, Ch=Ch)

    h_next, c_next = pl.pallas_call(
        kernel,
        out_shape=(jax.ShapeDtypeStruct((B, Ch, M), jnp.float32),
                   jax.ShapeDtypeStruct((B, Ch, M), jnp.float32)),
        grid_spec=pltpu.PrefetchScalarGridSpec(
            num_scalar_prefetch=0,
            grid=(B,),
            in_specs=[
                pl.BlockSpec((1, KKC, M), lambda b: (b, 0, 0)),
                pl.BlockSpec((4 * Ch, KKC), lambda b: (0, 0)),
                pl.BlockSpec((4 * Ch, 1), lambda b: (0, 0)),
                pl.BlockSpec((1, Ch, M), lambda b: (b, 0, 0)),
            ],
            out_specs=[
                pl.BlockSpec((1, Ch, M), lambda b: (b, 0, 0)),
                pl.BlockSpec((1, Ch, M), lambda b: (b, 0, 0)),
            ],
        ),
        compiler_params=pltpu.CompilerParams(
            dimension_semantics=("parallel",)),
    )(x_col, w2, b2, c_flat)

    # NCHW un-flatten (pure metadata reshape).
    return h_next.reshape(B, Ch, H, W), c_next.reshape(B, Ch, H, W)


conv_lstm_cell = jax.jit(_conv_lstm_cell_impl, static_argnums=(5,))


def _reference(x, h, c, weight_oihw, bias, K):
    """Pure-JAX f32 reference matching the PyTorch forward."""
    combined = jnp.concatenate([x.astype(jnp.float32), h], axis=1)
    gates = lax.conv_general_dilated(
        combined, weight_oihw, window_strides=(1, 1),
        padding=((K // 2, K // 2), (K // 2, K // 2)),
        dimension_numbers=("NCHW", "OIHW", "NCHW"))
    gates = gates + bias[None, :, None, None]
    i_g, f_g, o_g, g_g = jnp.split(gates, 4, axis=1)
    i_g = jax.nn.sigmoid(i_g)
    f_g = jax.nn.sigmoid(f_g)
    o_g = jax.nn.sigmoid(o_g)
    g_g = jnp.tanh(g_g)
    c_next = f_g * c + i_g * g_g
    h_next = o_g * jnp.tanh(c_next)
    return h_next, c_next


if __name__ == "__main__":
    # Small shapes consistent with the module: batch=2, in_ch=4, hidden=32,
    # 16x16 spatial, kernel_size=3.
    B, Cin, Ch, H, W, K = 2, 4, 32, 16, 16, 3

    key = jax.random.PRNGKey(0)
    kx, kh, kc, kw, kb = jax.random.split(key, 5)

    x = jax.random.normal(kx, (B, Cin, H, W), dtype=jnp.float32)
    h0 = jax.random.normal(kh, (B, Ch, H, W), dtype=jnp.float32) * 0.5
    c0 = jax.random.normal(kc, (B, Ch, H, W), dtype=jnp.float32) * 0.5

    # Synthetic parameters (shapes from nn.Conv2d(Cin+Ch, 4*Ch, K)).
    weight = jax.random.normal(kw, (4 * Ch, Cin + Ch, K, K),
                               dtype=jnp.float32) * 0.1
    bias = jax.random.normal(kb, (4 * Ch,), dtype=jnp.float32) * 0.1

    h_next, c_next = conv_lstm_cell(x, h0, c0, weight, bias, K)
    jax.block_until_ready((h_next, c_next))

    h_ref, c_ref = _reference(x, h0, c0, weight, bias, K)
    assert h_next.shape == (B, Ch, H, W) and c_next.shape == (B, Ch, H, W)
    # Tolerance accounts for bf16 MXU operands vs the f32 reference
    # (observed error is a few 1e-3; 3e-2 leaves ample margin).
    assert jnp.allclose(h_next, h_ref, atol=3e-2, rtol=3e-2), \
        float(jnp.max(jnp.abs(h_next - h_ref)))
    assert jnp.allclose(c_next, c_ref, atol=3e-2, rtol=3e-2), \
        float(jnp.max(jnp.abs(c_next - c_ref)))

    print("KERNEL_OK")
</pallas_src>

<mosaic_0001>
module attributes {stable_mosaic.version = 11 : i64} {
  func.func @_convlstm_kernel(%arg0: i32, %arg1: memref<1x324x256xbf16, #tpu.memory_space<vmem>>, %arg2: memref<128x324xbf16, #tpu.memory_space<vmem>>, %arg3: memref<128x1xf32, #tpu.memory_space<vmem>>, %arg4: memref<1x32x256xf32, #tpu.memory_space<vmem>>, %arg5: memref<1x32x256xf32, #tpu.memory_space<vmem>>, %arg6: memref<1x32x256xf32, #tpu.memory_space<vmem>>) attributes {dimension_semantics = [#tpu.dimension_semantics<parallel>], iteration_bounds = array<i64: 2>, scalar_prefetch = 0 : i64, scratch_operands = 0 : i64, tpu.core_type = #tpu.core_type<tc>, window_params = [{transform_indices = @transform_0, window_bounds = array<i64: 1, 324, 256>}, {pipeline_mode = #tpu.pipeline_mode<synchronous>, transform_indices = @transform_1, window_bounds = array<i64: 128, 324>}, {pipeline_mode = #tpu.pipeline_mode<synchronous>, transform_indices = @transform_2, window_bounds = array<i64: 128, 1>}, {transform_indices = @transform_3, window_bounds = array<i64: 1, 32, 256>}, {transform_indices = @transform_4, window_bounds = array<i64: 1, 32, 256>}, {transform_indices = @transform_5, window_bounds = array<i64: 1, 32, 256>}]} {
    %c0 = arith.constant 0 : index
    %c0_0 = arith.constant 0 : index
    %0 = vector.load %arg2[%c0, %c0_0] : memref<128x324xbf16, #tpu.memory_space<vmem>>, vector<128x324xbf16>
    %c0_1 = arith.constant 0 : index
    %c0_2 = arith.constant 0 : index
    %c0_3 = arith.constant 0 : index
    %1 = vector.load %arg1[%c0_1, %c0_2, %c0_3] : memref<1x324x256xbf16, #tpu.memory_space<vmem>>, vector<1x324x256xbf16>
    %2 = vector.shape_cast %1 : vector<1x324x256xbf16> to vector<324x256xbf16>
    %cst = arith.constant dense<0.000000e+00> : vector<128x256xf32>
    %3 = tpu.matmul %0, %2, %cst {dimension_numbers = #tpu.dot_dimension_numbers<[1], [0], [0], [1], [0, 0, 1, 1], [], []>} : vector<128x324xbf16>, vector<324x256xbf16>, vector<128x256xf32> -> vector<128x256xf32>
    %c0_4 = arith.constant 0 : index
    %c0_5 = arith.constant 0 : index
    %4 = vector.load %arg3[%c0_4, %c0_5] : memref<128x1xf32, #tpu.memory_space<vmem>>, vector<128x1xf32>
    %5 = vector.broadcast %4 : vector<128x1xf32> to vector<128x256xf32>
    %6 = arith.addf %3, %5 : vector<128x256xf32>
    %7 = vector.extract_strided_slice %6 {offsets = [0, 0], sizes = [32, 256], strides = [1, 1]} : vector<128x256xf32> to vector<32x256xf32>
    %8 = arith.negf %7 : vector<32x256xf32>
    %9 = math.exp %8 : vector<32x256xf32>
    %cst_6 = arith.constant 1.000000e+00 : f32
    %10 = vector.broadcast %cst_6 : f32 to vector<32x256xf32>
    %11 = arith.addf %10, %9 : vector<32x256xf32>
    %12 = arith.divf %10, %11 : vector<32x256xf32>
    %13 = vector.extract_strided_slice %6 {offsets = [32, 0], sizes = [32, 256], strides = [1, 1]} : vector<128x256xf32> to vector<32x256xf32>
    %14 = arith.negf %13 : vector<32x256xf32>
    %15 = math.exp %14 : vector<32x256xf32>
    %cst_7 = arith.constant 1.000000e+00 : f32
    %16 = vector.broadcast %cst_7 : f32 to vector<32x256xf32>
    %17 = arith.addf %16, %15 : vector<32x256xf32>
    %18 = arith.divf %16, %17 : vector<32x256xf32>
    %19 = vector.extract_strided_slice %6 {offsets = [64, 0], sizes = [32, 256], strides = [1, 1]} : vector<128x256xf32> to vector<32x256xf32>
    %20 = arith.negf %19 : vector<32x256xf32>
    %21 = math.exp %20 : vector<32x256xf32>
    %cst_8 = arith.constant 1.000000e+00 : f32
    %22 = vector.broadcast %cst_8 : f32 to vector<32x256xf32>
    %23 = arith.addf %22, %21 : vector<32x256xf32>
    %24 = arith.divf %22, %23 : vector<32x256xf32>
    %25 = vector.extract_strided_slice %6 {offsets = [96, 0], sizes = [32, 256], strides = [1, 1]} : vector<128x256xf32> to vector<32x256xf32>
    %26 = math.tanh %25 : vector<32x256xf32>
    %c0_9 = arith.constant 0 : index
    %c0_10 = arith.constant 0 : index
    %c0_11 = arith.constant 0 : index
    %27 = vector.load %arg4[%c0_9, %c0_10, %c0_11] : memref<1x32x256xf32, #tpu.memory_space<vmem>>, vector<1x32x256xf32>
    %28 = vector.shape_cast %27 : vector<1x32x256xf32> to vector<32x256xf32>
    %29 = arith.mulf %18, %28 : vector<32x256xf32>
    %30 = arith.mulf %12, %26 : vector<32x256xf32>
    %31 = arith.addf %29, %30 : vector<32x256xf32>
    %32 = math.tanh %31 : vector<32x256xf32>
    %33 = arith.mulf %24, %32 : vector<32x256xf32>
    %c0_12 = arith.constant 0 : index
    %c0_13 = arith.constant 0 : index
    %c0_14 = arith.constant 0 : index
    %34 = vector.load %arg5[%c0_12, %c0_13, %c0_14] : memref<1x32x256xf32, #tpu.memory_space<vmem>>, vector<1x32x256xf32>
    %35 = vector.shape_cast %34 : vector<1x32x256xf32> to vector<32x256xf32>
    %36 = vector.shape_cast %33 : vector<32x256xf32> to vector<1x32x256xf32>
    tpu.vector_store %arg5[%c0_12, %c0_13, %c0_14], %36 {strides = array<i32>} : memref<1x32x256xf32, #tpu.memory_space<vmem>>, vector<1x32x256xf32>,
    %c0_15 = arith.constant 0 : index
    %c0_16 = arith.constant 0 : index
    %c0_17 = arith.constant 0 : index
    %37 = vector.load %arg6[%c0_15, %c0_16, %c0_17] : memref<1x32x256xf32, #tpu.memory_space<vmem>>, vector<1x32x256xf32>
    %38 = vector.shape_cast %37 : vector<1x32x256xf32> to vector<32x256xf32>
    %39 = vector.shape_cast %31 : vector<32x256xf32> to vector<1x32x256xf32>
    tpu.vector_store %arg6[%c0_15, %c0_16, %c0_17], %39 {strides = array<i32>} : memref<1x32x256xf32, #tpu.memory_space<vmem>>, vector<1x32x256xf32>,
    return
  }
  func.func @transform_0(%arg0: i32) -> (i32, i32, i32) {
    %c0_i32 = arith.constant 0 : i32
    %c0_i32_0 = arith.constant 0 : i32
    %c0_i32_1 = arith.constant 0 : i32
    return %arg0, %c0_i32, %c0_i32_0 : i32, i32, i32
  }
  func.func @transform_1(%arg0: i32) -> (i32, i32) {
    %c0_i32 = arith.constant 0 : i32
    %c0_i32_0 = arith.constant 0 : i32
    %c0_i32_1 = arith.constant 0 : i32
    return %c0_i32, %c0_i32_0 : i32, i32
  }
  func.func @transform_2(%arg0: i32) -> (i32, i32) {
    %c0_i32 = arith.constant 0 : i32
    %c0_i32_0 = arith.constant 0 : i32
    %c0_i32_1 = arith.constant 0 : i32
    return %c0_i32, %c0_i32_0 : i32, i32
  }
  func.func @transform_3(%arg0: i32) -> (i32, i32, i32) {
    %c0_i32 = arith.constant 0 : i32
    %c0_i32_0 = arith.constant 0 : i32
    %c0_i32_1 = arith.constant 0 : i32
    return %arg0, %c0_i32, %c0_i32_0 : i32, i32, i32
  }
  func.func @transform_4(%arg0: i32) -> (i32, i32, i32) {
    %c0_i32 = arith.constant 0 : i32
    %c0_i32_0 = arith.constant 0 : i32
    %c0_i32_1 = arith.constant 0 : i32
    return %arg0, %c0_i32, %c0_i32_0 : i32, i32, i32
  }
  func.func @transform_5(%arg0: i32) -> (i32, i32, i32) {
    %c0_i32 = arith.constant 0 : i32
    %c0_i32_0 = arith.constant 0 : i32
    %c0_i32_1 = arith.constant 0 : i32
    return %arg0, %c0_i32, %c0_i32_0 : i32, i32, i32
  }
}

</mosaic_0001>

<llo_original>
// kernel: _conv_lstm_cell_impl.1
$region0: #{_conv_lstm_cell_impl.1}
  #allocation0 [shape = 'u32[]', space=smem, size = 0x4, offset = 0x4, fixed_abs, tag = 'smem constant byte address 0x4 - core index']
  #allocation1 [shape = 'u32[144,128]{1,0:T(1,128)}', space=vmem, size = 0x12000, scoped, tag = 'internal scratch']
  %s0 = inlined_call_operand.vmem [shape: bf16[2,324,256], index: 0, kind: input, shape index: {}]
  %s1 = inlined_call_operand.vmem [shape: bf16[128,324], index: 1, kind: input, shape index: {}]
  %s2 = inlined_call_operand.vmem [shape: f32[128,1], index: 2, kind: input, shape index: {}]
  %s3 = inlined_call_operand.vmem [shape: f32[2,32,256], index: 3, kind: input, shape index: {}]
  %s4 = inlined_call_operand.vmem [shape: f32[2,32,256], index: 4, kind: output, shape index: {0}]
  %s5 = inlined_call_operand.vmem [shape: f32[2,32,256], index: 5, kind: output, shape index: {1}]
  %6 = xla_tuple %s4, %s5
  %s7 = sld [smem:[#allocation0]]
  $region57: #{_conv_lstm_cell_impl.1} parent=0
    _
  %s9 = ssub.s32 1, %s7
  %s10 = scalar_select 0, %s9, %s7
  loop: start=0, step=1, limit=4
  $region2: #{_conv_lstm_cell_impl.1} parent=0 // loop_pre_header
    _
  $region3: #{_conv_lstm_cell_impl.1} parent=0 // loop_header
    %s12 = sphi 0, %s16
    %p13 = scmp.ge.s32.totalorder %s12, 4
    %s22 = sphi 0, %s24
    %s25 = sphi 0, %s22
    %s26 = sphi 0, %s25
    %s42 = sphi 0, %s26
    %s46 = sphi 0, %s46
    %s48 = sphi 0, %s46
    %s49 = sphi 0, %s48
    %s63 = sphi 0, %s49
    %s67 = sphi 0, %s67
    %s69 = sphi 0, %s67
    %s70 = sphi 0, %s69
    %s84 = sphi 0, %s70
    %s90 = sphi 0, %s92
    %s93 = sphi 0, %s90
    %s94 = sphi 0, %s93
    %s110 = sphi 0, %s94
    %s116 = sphi 0, %s118
    %s119 = sphi 0, %s116
    %s120 = sphi 0, %s119
    %s136 = sphi 0, %s120
    %s142 = sphi 0, %s144
    %s145 = sphi 0, %s142
    %s146 = sphi 0, %s145
    %s162 = sphi 0, %s146
  $region4: #{_conv_lstm_cell_impl.1} parent=0 // loop_header_branch
    %15 = sbr.rel (%p13) target = $region8
  $region5: #{_conv_lstm_cell_impl.1} parent=0 // loop_body
    %s17 = ssub.s32 %s12, 1
    %s18 = ssub.s32 %s12, 2
    %s19 = sadd.s32 %s12, 1
    %s20 = ssub.s32 %s12, %s19
    %p21 = scmp.eq.s32.totalorder %s20, 0
    %s23 = sadd.s32 %s22, 1
    %s24 = scalar_select %p21, %s22, %s23
    %p27 = pneg %p21
    %p28 = scmp.eq.s32.totalorder %s12, 1
    %p29 = por %p27, %p28
    %p30 = scmp.ne.s32.totalorder %s22, %s25
    %p31 = scmp.eq.s32.totalorder %s12, 0
    %p32 = por %p30, %p31
    %p33 = scmp.ne.s32.totalorder %s22, %s25
    %p34 = scmp.eq.s32.totalorder %s17, 1
    %p35 = por %p33, %p34
    %p36 = scmp.ne.s32.totalorder %s25, %s26
    %p37 = scmp.eq.s32.totalorder %s17, 0
    %p38 = por %p36, %p37
    %p39 = scmp.ne.s32.totalorder %s25, %s26
    %p40 = scmp.eq.s32.totalorder %s18, 1
    %p41 = por %p39, %p40
    %p43 = scmp.ne.s32.totalorder %s26, %s42
    %p44 = scmp.eq.s32.totalorder %s18, 0
    %p45 = por %p43, %p44
    %s47 = sadd.s32 %s46, 1
    %p50 = scmp.eq.s32.totalorder %s12, 1
    %p51 = scmp.ne.s32.totalorder %s46, %s48
    %p52 = scmp.eq.s32.totalorder %s12, 0
    %p53 = por %p51, %p52
    %p54 = scmp.ne.s32.totalorder %s46, %s48
    %p55 = scmp.eq.s32.totalorder %s17, 1
    %p56 = por %p54, %p55
    %p57 = scmp.ne.s32.totalorder %s48, %s49
    %p58 = scmp.eq.s32.totalorder %s17, 0
    %p59 = por %p57, %p58
    %p60 = scmp.ne.s32.totalorder %s48, %s49
    %p61 = scmp.eq.s32.totalorder %s18, 1
    %p62 = por %p60, %p61
    %p64 = scmp.ne.s32.totalorder %s49, %s63
    %p65 = scmp.eq.s32.totalorder %s18, 0
    %p66 = por %p64, %p65
    %s68 = sadd.s32 %s67, 1
    %p71 = scmp.eq.s32.totalorder %s12, 1
    %p72 = scmp.ne.s32.totalorder %s67, %s69
    %p73 = scmp.eq.s32.totalorder %s12, 0
    %p74 = por %p72, %p73
    %p75 = scmp.ne.s32.totalorder %s67, %s69
    %p76 = scmp.eq.s32.totalorder %s17, 1
    %p77 = por %p75, %p76
    %p78 = scmp.ne.s32.totalorder %s69, %s70
    %p79 = scmp.eq.s32.totalorder %s17, 0
    %p80 = por %p78, %p79
    %p81 = scmp.ne.s32.totalorder %s69, %s70
    %p82 = scmp.eq.s32.totalorder %s18, 1
    %p83 = por %p81, %p82
    %p85 = scmp.ne.s32.totalorder %s70, %s84
    %p86 = scmp.eq.s32.totalorder %s18, 0
    %p87 = por %p85, %p86
    %s88 = ssub.s32 %s12, %s19
    %p89 = scmp.eq.s32.totalorder %s88, 0
    %s91 = sadd.s32 %s90, 1
    %s92 = scalar_select %p89, %s90, %s91
    %p95 = pneg %p89
    %p96 = scmp.eq.s32.totalorder %s12, 1
    %p97 = por %p95, %p96
    %p98 = scmp.ne.s32.totalorder %s90, %s93
    %p99 = scmp.eq.s32.totalorder %s12, 0
    %p100 = por %p98, %p99
    %p101 = scmp.ne.s32.totalorder %s90, %s93
    %p102 = scmp.eq.s32.totalorder %s17, 1
    %p103 = por %p101, %p102
    %p104 = scmp.ne.s32.totalorder %s93, %s94
    %p105 = scmp.eq.s32.totalorder %s17, 0
    %p106 = por %p104, %p105
    %p107 = scmp.ne.s32.totalorder %s93, %s94
    %p108 = scmp.eq.s32.totalorder %s18, 1
    %p109 = por %p107, %p108
    %p111 = scmp.ne.s32.totalorder %s94, %s110
    %p112 = scmp.eq.s32.totalorder %s18, 0
    %p113 = por %p111, %p112
    %s114 = ssub.s32 %s12, %s19
    %p115 = scmp.eq.s32.totalorder %s114, 0
    %s117 = sadd.s32 %s116, 1
    %s118 = scalar_select %p115, %s116, %s117
    %p121 = pneg %p115
    %p122 = scmp.eq.s32.totalorder %s12, 1
    %p123 = por %p121, %p122
    %p124 = scmp.ne.s32.totalorder %s116, %s119
    %p125 = scmp.eq.s32.totalorder %s12, 0
    %p126 = por %p124, %p125
    %p127 = scmp.ne.s32.totalorder %s116, %s119
    %p128 = scmp.eq.s32.totalorder %s17, 1
    %p129 = por %p127, %p128
    %p130 = scmp.ne.s32.totalorder %s119, %s120
    %p131 = scmp.eq.s32.totalorder %s17, 0
    %p132 = por %p130, %p131
    %p133 = scmp.ne.s32.totalorder %s119, %s120
    %p134 = scmp.eq.s32.totalorder %s18, 1
    %p135 = por %p133, %p134
    %p137 = scmp.ne.s32.totalorder %s120, %s136
    %p138 = scmp.eq.s32.totalorder %s18, 0
    %p139 = por %p137, %p138
    %s140 = ssub.s32 %s12, %s19
    %p141 = scmp.eq.s32.totalorder %s140, 0
    %s143 = sadd.s32 %s142, 1
    %s144 = scalar_select %p141, %s142, %s143
    %p147 = pneg %p141
    %p148 = scmp.eq.s32.totalorder %s12, 1
    %p149 = por %p147, %p148
    %p150 = scmp.ne.s32.totalorder %s142, %s145
    %p151 = scmp.eq.s32.totalorder %s12, 0
    %p152 = por %p150, %p151
    %p153 = scmp.ne.s32.totalorder %s142, %s145
    %p154 = scmp.eq.s32.totalorder %s17, 1
    %p155 = por %p153, %p154
    %p156 = scmp.ne.s32.totalorder %s145, %s146
    %p157 = scmp.eq.s32.totalorder %s17, 0
    %p158 = por %p156, %p157
    %p159 = scmp.ne.s32.totalorder %s145, %s146
    %p160 = scmp.eq.s32.totalorder %s18, 1
    %p161 = por %p159, %p160
    %p163 = scmp.ne.s32.totalorder %s146, %s162
    %p164 = scmp.eq.s32.totalorder %s18, 0
    %p165 = por %p163, %p164
    %p166 = scmp.le.s32.totalorder 1, %s12
    %p167 = scmp.lt.s32.totalorder %s12, 3
    %p168 = pnand %p166, %p167
    %p169 = pneg %p168
    // Predicated region
    $region9: #{_conv_lstm_cell_impl.1} parent=5 // pred_check
      _
    $region10: #{_conv_lstm_cell_impl.1} parent=5 // pred_check_branch
      %171 = sbr.rel (%p168) target = $region12
    $region11: #{_conv_lstm_cell_impl.1} parent=5 // pred_region
      %s172 = ssub.s32 %s12, 1
      // Predicated region
      $region13: #{_conv_lstm_cell_impl.1} parent=11 // pred_check
        %p173 = pneg %p59
      $region14: #{_conv_lstm_cell_impl.1} parent=11 // pred_check_branch
        %175 = sbr.rel (%p173) target = $region16
      $region15: #{_conv_lstm_cell_impl.1} parent=11 // pred_region
        _
      $region16: #{_conv_lstm_cell_impl.1} parent=11 // pred_fallthru
        _
      // Predicated region
      $region17: #{_conv_lstm_cell_impl.1} parent=11 // pred_check
        %p176 = pneg %p80
      $region18: #{_conv_lstm_cell_impl.1} parent=11 // pred_check_branch
        %178 = sbr.rel (%p176) target = $region20
      $region19: #{_conv_lstm_cell_impl.1} parent=11 // pred_region
        _
      $region20: #{_conv_lstm_cell_impl.1} parent=11 // pred_fallthru
        _
    $region12: #{_conv_lstm_cell_impl.1} parent=5 // pred_fallthru
      _
    %p179 = scmp.lt.s32.totalorder %s12, 2
    // Predicated region
    $region21: #{_conv_lstm_cell_impl.1} parent=5 // pred_check
      %p180 = pneg %p179
    $region22: #{_conv_lstm_cell_impl.1} parent=5 // pred_check_branch
      %182 = sbr.rel (%p180) target = $region24
    $region23: #{_conv_lstm_cell_impl.1} parent=5 // pred_region
      // Predicated region
      $region25: #{_conv_lstm_cell_impl.1} parent=23 // pred_check
        %p183 = pneg %p32
      $region26: #{_conv_lstm_cell_impl.1} parent=23 // pred_check_branch
        %185 = sbr.rel (%p183) target = $region28
      $region27: #{_conv_lstm_cell_impl.1} parent=23 // pred_region
        %p186 = scmp.lt.s32.totalorder %s12, 1
        %s187 = scalar_select %p186, %s12, 1
        %s188 = smul.addr %s187, 82
        %s189 = smul.addr %s188, 4
        %s190 = scalar_lea.vmem %s0, %s189
      $region28: #{_conv_lstm_cell_impl.1} parent=23 // pred_fallthru
        _
      // Predicated region
      $region29: #{_conv_lstm_cell_impl.1} parent=23 // pred_check
        %p191 = pneg %p100
      $region30: #{_conv_lstm_cell_impl.1} parent=23 // pred_check_branch
        %193 = sbr.rel (%p191) target = $region32
      $region31: #{_conv_lstm_cell_impl.1} parent=23 // pred_region
        %p194 = scmp.lt.s32.totalorder %s12, 1
        %s195 = scalar_select %p194, %s12, 1
        %s196 = smul.addr %s195, 8
        %s197 = smul.addr %s196, 8
        %s198 = scalar_lea.vmem %s3, %s197
      $region32: #{_conv_lstm_cell_impl.1} parent=23 // pred_fallthru
        _
    $region24: #{_conv_lstm_cell_impl.1} parent=5 // pred_fallthru
      _
    %p199 = scmp.le.s32.totalorder 1, %s12
    %p200 = scmp.lt.s32.totalorder %s12, 3
    %p201 = pnand %p199, %p200
    %p202 = pneg %p201
    // Predicated region
    $region33: #{_conv_lstm_cell_impl.1} parent=5 // pred_check
      _
    $region34: #{_conv_lstm_cell_impl.1} parent=5 // pred_check_branch
      %204 = sbr.rel (%p201) target = $region36
    $region35: #{_conv_lstm_cell_impl.1} parent=5 // pred_region
      %s205 = ssub.s32 %s12, 1
      %p206 = scmp.lt.s32.totalorder %s17, 1
      %s207 = scalar_select %p206, %s17, 1
      %s208 = smul.addr %s207, 82
      %s209 = smul.addr %s208, 4
      %s210 = scalar_lea.vmem %s0, %s209
      %p211 = pneg %p38
      %p212 = pneg %p35
      %p213 = pneg %p59
      %p214 = pneg %p56
      %p215 = pneg %p80
      %p216 = pneg %p77
      %p217 = scmp.lt.s32.totalorder %s17, 1
      %s218 = scalar_select %p217, %s17, 1
      %s219 = smul.addr %s218, 8
      %s220 = smul.addr %s219, 8
      %s221 = scalar_lea.vmem %s3, %s220
      %p222 = pneg %p106
      %p223 = pneg %p103
      %p224 = pneg %p132
      %p225 = pneg %p129
      %p226 = scmp.lt.s32.totalorder %s17, 1
      %s227 = scalar_select %p226, %s17, 1
      %s228 = smul.addr %s227, 8
      %s229 = smul.addr %s228, 8
      %s230 = scalar_lea.vmem %s4, %s229
      %p231 = pneg %p158
      %p232 = pneg %p155
      %p233 = scmp.lt.s32.totalorder %s17, 1
      %s234 = scalar_select %p233, %s17, 1
      %s235 = smul.addr %s234, 8
      %s236 = smul.addr %s235, 8
      %s237 = scalar_lea.vmem %s5, %s236
      %p238 = scmp.lt.s32.totalorder %s17, 1
      %s239 = scalar_select %p238, %s17, 1
      %s240 = smul.addr %s239, 82
      %s241 = smul.addr %s240, 4
      %s242 = scalar_lea.vmem %s0, %s241
      %p243 = scmp.lt.s32.totalorder %s17, 1
      %s244 = scalar_select %p243, %s17, 1
      %s245 = smul.addr %s244, 8
      %s246 = smul.addr %s245, 8
      %s247 = scalar_lea.vmem %s3, %s246
      %p248 = scmp.lt.s32.totalorder %s17, 1
      %s249 = scalar_select %p248, %s17, 1
      %s250 = smul.addr %s249, 8
      %s251 = smul.addr %s250, 8
      %s252 = scalar_lea.vmem %s4, %s251
      %p253 = scmp.lt.s32.totalorder %s17, 1
      %s254 = scalar_select %p253, %s17, 1
      %s255 = smul.addr %s254, 8
      %s256 = smul.addr %s255, 8
      %s257 = scalar_lea.vmem %s5, %s256
      %v259 = vld [vmem:[%s1] sm:$0xff]
      %v260 = vld [vmem:[%s1 + $0x8] sm:$0xf]
      %v261 = vld [vmem:[%s1 + $0xc] sm:$0xff]
      %v262 = vld [vmem:[%s1 + $0x14] sm:$0xf]
      %v263 = vld [vmem:[%s1 + $0x18] sm:$0xff]
      %v264 = vld [vmem:[%s1 + $0x20] sm:$0xf]
      %v265 = vld [vmem:[%s1 + $0x24] sm:$0xff]
      %v266 = vld [vmem:[%s1 + $0x2c] sm:$0xf]
      %v267 = vld [vmem:[%s1 + $0x30] sm:$0xff]
      %v268 = vld [vmem:[%s1 + $0x38] sm:$0xf]
      %v269 = vld [vmem:[%s1 + $0x3c] sm:$0xff]
      %v270 = vld [vmem:[%s1 + $0x44] sm:$0xf]
      %v271 = vld [vmem:[%s1 + $0x48] sm:$0xff]
      %v272 = vld [vmem:[%s1 + $0x50] sm:$0xf]
      %v273 = vld [vmem:[%s1 + $0x54] sm:$0xff]
      %v274 = vld [vmem:[%s1 + $0x5c] sm:$0xf]
      %v275 = vld [vmem:[%s1 + $0x60] sm:$0xff]
      %v276 = vld [vmem:[%s1 + $0x68] sm:$0xf]
      %v277 = vld [vmem:[%s1 + $0x6c] sm:$0xff]
      %v278 = vld [vmem:[%s1 + $0x74] sm:$0xf]
      %v279 = vld [vmem:[%s1 + $0x78] sm:$0xff]
      %v280 = vld [vmem:[%s1 + $0x80] sm:$0xf]
      %v281 = vld [vmem:[%s1 + $0x84] sm:$0xff]
      %v282 = vld [vmem:[%s1 + $0x8c] sm:$0xf]
      %v283 = vld [vmem:[%s1 + $0x90] sm:$0xff]
      %v284 = vld [vmem:[%s1 + $0x98] sm:$0xf]
      %v285 = vld [vmem:[%s1 + $0x9c] sm:$0xff]
      %v286 = vld [vmem:[%s1 + $0xa4] sm:$0xf]
      %v287 = vld [vmem:[%s1 + $0xa8] sm:$0xff]
      %v288 = vld [vmem:[%s1 + $0xb0] sm:$0xf]
      %v289 = vld [vmem:[%s1 + $0xb4] sm:$0xff]
      %v290 = vld [vmem:[%s1 + $0xbc] sm:$0xf]
      %v291 = vld [vmem:[%s242] sm:$0xff]
      %v292 = vld [vmem:[%s242 + $0x8] sm:$0xff]
      %v293 = vld [vmem:[%s242 + $0x10] sm:$0xff]
      %v294 = vld [vmem:[%s242 + $0x18] sm:$0xff]
      %v295 = vld [vmem:[%s242 + $0x20] sm:$0xff]
      %v296 = vld [vmem:[%s242 + $0x28] sm:$0xff]
      %v297 = vld [vmem:[%s242 + $0x30] sm:$0xff]
      %v298 = vld [vmem:[%s242 + $0x38] sm:$0xff]
      %v299 = vld [vmem:[%s242 + $0x40] sm:$0xff]
      %v300 = vld [vmem:[%s242 + $0x48] sm:$0xff]
      %v301 = vld [vmem:[%s242 + $0x50] sm:$0xff]
      %v302 = vld [vmem:[%s242 + $0x58] sm:$0xff]
      %v303 = vld [vmem:[%s242 + $0x60] sm:$0xff]
      %v304 = vld [vmem:[%s242 + $0x68] sm:$0xff]
      %v305 = vld [vmem:[%s242 + $0x70] sm:$0xff]
      %v306 = vld [vmem:[%s242 + $0x78] sm:$0xff]
      %v307 = vld [vmem:[%s242 + $0x80] sm:$0xff]
      %v308 = vld [vmem:[%s242 + $0x88] sm:$0xff]
      %v309 = vld [vmem:[%s242 + $0x90] sm:$0xff]
      %v310 = vld [vmem:[%s242 + $0x98] sm:$0xff]
      %v311 = vld [vmem:[%s242 + $0xa0] sm:$0xff]
      %v312 = vld [vmem:[%s242 + $0xa8] sm:$0xff]
      %v313 = vld [vmem:[%s242 + $0xb0] sm:$0xff]
      %v314 = vld [vmem:[%s242 + $0xb8] sm:$0xff]
      %v315 = vld [vmem:[%s242 + $0xc0] sm:$0xff]
      %v316 = vld [vmem:[%s242 + $0xc8] sm:$0xff]
      %v317 = vld [vmem:[%s242 + $0xd0] sm:$0xff]
      %v318 = vld [vmem:[%s242 + $0xd8] sm:$0xff]
      %v319 = vld [vmem:[%s242 + $0xe0] sm:$0xff]
      %v320 = vld [vmem:[%s242 + $0xe8] sm:$0xff]
      %v321 = vld [vmem:[%s242 + $0xf0] sm:$0xff]
      %v322 = vld [vmem:[%s242 + $0xf8] sm:$0xff]
      %v323 = vld [vmem:[%s242 + $0x100] sm:$0xff]
      %v324 = vld [vmem:[%s242 + $0x108] sm:$0xff]
      %v325 = vld [vmem:[%s242 + $0x110] sm:$0xff]
      %v326 = vld [vmem:[%s242 + $0x118] sm:$0xff]
      %v327 = vld [vmem:[%s242 + $0x120] sm:$0xff]
      %v328 = vld [vmem:[%s242 + $0x128] sm:$0xff]
      %v329 = vld [vmem:[%s242 + $0x130] sm:$0xff]
      %v330 = vld [vmem:[%s242 + $0x138] sm:$0xff]
      %v331 = vld [vmem:[%s242 + $0x140] sm:$0x33]
      %v332 = vld [vmem:[%s2] sm:$0xff]
      %v333 = vld [vmem:[%s2 + $0x8] sm:$0xff]
      %v334 = vld [vmem:[%s2 + $0x10] sm:$0xff]
      %v335 = vld [vmem:[%s2 + $0x18] sm:$0xff]
      %v336 = vld [vmem:[%s2 + $0x20] sm:$0xff]
      %v337 = vld [vmem:[%s2 + $0x28] sm:$0xff]
      %v338 = vld [vmem:[%s2 + $0x30] sm:$0xff]
      %v339 = vld [vmem:[%s2 + $0x38] sm:$0xff]
      %v340 = vld [vmem:[%s2 + $0x40] sm:$0xff]
      %v341 = vld [vmem:[%s2 + $0x48] sm:$0xff]
      %v342 = vld [vmem:[%s2 + $0x50] sm:$0xff]
      %v343 = vld [vmem:[%s2 + $0x58] sm:$0xff]
      %v344 = vld [vmem:[%s2 + $0x60] sm:$0xff]
      %v345 = vld [vmem:[%s2 + $0x68] sm:$0xff]
      %v346 = vld [vmem:[%s2 + $0x70] sm:$0xff]
      %v347 = vld [vmem:[%s2 + $0x78] sm:$0xff]
      %349 = vset.pattern.permute.xlu0 0
      %350 = vperm.xlu0 %349, %v332
      %v351 = vpop.permute.xlu0 %350
      %354 = vset.pattern.permute.xlu0 0
      %355 = vperm.xlu0 %354, %v333
      %v356 = vpop.permute.xlu0 %355
      %359 = vset.pattern.permute.xlu0 0
      %360 = vperm.xlu0 %359, %v334
      %v361 = vpop.permute.xlu0 %360
      %364 = vset.pattern.permute.xlu0 0
      %365 = vperm.xlu0 %364, %v335
      %v366 = vpop.permute.xlu0 %365
      %369 = vset.pattern.permute.xlu0 0
      %370 = vperm.xlu0 %369, %v336
      %v371 = vpop.permute.xlu0 %370
      %374 = vset.pattern.permute.xlu0 0
      %375 = vperm.xlu0 %374, %v337
      %v376 = vpop.permute.xlu0 %375
      %379 = vset.pattern.permute.xlu0 0
      %380 = vperm.xlu0 %379, %v338
      %v381 = vpop.permute.xlu0 %380
      %384 = vset.pattern.permute.xlu0 0
      %385 = vperm.xlu0 %384, %v339
      %v386 = vpop.permute.xlu0 %385
      %389 = vset.pattern.permute.xlu0 0
      %390 = vperm.xlu0 %389, %v340
      %v391 = vpop.permute.xlu0 %390
      %394 = vset.pattern.permute.xlu0 0
      %395 = vperm.xlu0 %394, %v341
      %v396 = vpop.permute.xlu0 %395
      %399 = vset.pattern.permute.xlu0 0
      %400 = vperm.xlu0 %399, %v342
      %v401 = vpop.permute.xlu0 %400
      %404 = vset.pattern.permute.xlu0 0
      %405 = vperm.xlu0 %404, %v343
      %v406 = vpop.permute.xlu0 %405
      %409 = vset.pattern.permute.xlu0 0
      %410 = vperm.xlu0 %409, %v344
      %v411 = vpop.permute.xlu0 %410
      %414 = vset.pattern.permute.xlu0 0
      %415 = vperm.xlu0 %414, %v345
      %v416 = vpop.permute.xlu0 %415
      %419 = vset.pattern.permute.xlu0 0
      %420 = vperm.xlu0 %419, %v346
      %v421 = vpop.permute.xlu0 %420
      %424 = vset.pattern.permute.xlu0 0
      %425 = vperm.xlu0 %424, %v347
      %v426 = vpop.permute.xlu0 %425
      %v460 = vunpack.c.l.b16 %v259
      %v461 = vunpack.c.h.b16 %v259
      %v462 = vunpack.c.l.b16 %v260
      %v463 = vunpack.c.l.b16 %v261
      %v464 = vunpack.c.h.b16 %v261
      %v465 = vunpack.c.l.b16 %v262
      %v466 = vunpack.c.l.b16 %v263
      %v467 = vunpack.c.h.b16 %v263
      %v468 = vunpack.c.l.b16 %v264
      %v469 = vunpack.c.l.b16 %v265
      %v470 = vunpack.c.h.b16 %v265
      %v471 = vunpack.c.l.b16 %v266
      %v472 = vunpack.c.l.b16 %v267
      %v473 = vunpack.c.h.b16 %v267
      %v474 = vunpack.c.l.b16 %v268
      %v475 = vunpack.c.l.b16 %v269
      %v476 = vunpack.c.h.b16 %v269
      %v477 = vunpack.c.l.b16 %v270
      %v478 = vunpack.c.l.b16 %v271
      %v479 = vunpack.c.h.b16 %v271
      %v480 = vunpack.c.l.b16 %v272
      %v481 = vunpack.c.l.b16 %v273
      %v482 = vunpack.c.h.b16 %v273
      %v483 = vunpack.c.l.b16 %v274
      %v484 = vunpack.c.l.b16 %v275
      %v485 = vunpack.c.h.b16 %v275
      %v486 = vunpack.c.l.b16 %v276
      %v487 = vunpack.c.l.b16 %v277
      %v488 = vunpack.c.h.b16 %v277
      %v489 = vunpack.c.l.b16 %v278
      %v490 = vunpack.c.l.b16 %v279
      %v491 = vunpack.c.h.b16 %v279
      %v492 = vunpack.c.l.b16 %v280
      %v493 = vunpack.c.l.b16 %v281
      %v494 = vunpack.c.h.b16 %v281
      %v495 = vunpack.c.l.b16 %v282
      %v496 = vunpack.c.l.b16 %v283
      %v497 = vunpack.c.h.b16 %v283
      %v498 = vunpack.c.l.b16 %v284
      %v499 = vunpack.c.l.b16 %v285
      %v500 = vunpack.c.h.b16 %v285
      %v501 = vunpack.c.l.b16 %v286
      %v502 = vunpack.c.l.b16 %v287
      %v503 = vunpack.c.h.b16 %v287
      %v504 = vunpack.c.l.b16 %v288
      %v505 = vunpack.c.l.b16 %v289
      %v506 = vunpack.c.h.b16 %v289
      %v507 = vunpack.c.l.b16 %v290
      %v508 = vpack.c.b16 %v463, %v460
      %v509 = vpack.c.b16 %v464, %v461
      %v510 = vpack.c.b16 %v465, %v462
      %v511 = vpack.c.b16 %v469, %v466
      %v512 = vpack.c.b16 %v470, %v467
      %v513 = vpack.c.b16 %v471, %v468
      %v514 = vpack.c.b16 %v475, %v472
      %v515 = vpack.c.b16 %v476, %v473
      %v516 = vpack.c.b16 %v477, %v474
      %v517 = vpack.c.b16 %v481, %v478
      %v518 = vpack.c.b16 %v482, %v479
      %v519 = vpack.c.b16 %v483, %v480
      %v520 = vpack.c.b16 %v487, %v484
      %v521 = vpack.c.b16 %v488, %v485
      %v522 = vpack.c.b16 %v489, %v486
      %v523 = vpack.c.b16 %v493, %v490
      %v524 = vpack.c.b16 %v494, %v491
      %v525 = vpack.c.b16 %v495, %v492
      %v526 = vpack.c.b16 %v499, %v496
      %v527 = vpack.c.b16 %v500, %v497
      %v528 = vpack.c.b16 %v501, %v498
      %v529 = vpack.c.b16 %v505, %v502
      %v530 = vpack.c.b16 %v506, %v503
      %v531 = vpack.c.b16 %v507, %v504
      %v589 = vunpack.c.l.b16 %v291
      %v590 = vunpack.c.h.b16 %v291
      %v591 = vunpack.c.l.b16 %v292
      %v592 = vunpack.c.h.b16 %v292
      %v593 = vunpack.c.l.b16 %v293
      %v594 = vunpack.c.h.b16 %v293
      %v595 = vunpack.c.l.b16 %v294
      %v596 = vunpack.c.h.b16 %v294
      %v597 = vunpack.c.l.b16 %v295
      %v598 = vunpack.c.h.b16 %v295
      %v599 = vunpack.c.l.b16 %v296
      %v600 = vunpack.c.h.b16 %v296
      %v601 = vunpack.c.l.b16 %v297
      %v602 = vunpack.c.h.b16 %v297
      %v603 = vunpack.c.l.b16 %v298
      %v604 = vunpack.c.h.b16 %v298
      %v605 = vunpack.c.l.b16 %v299
      %v606 = vunpack.c.h.b16 %v299
      %v607 = vunpack.c.l.b16 %v300
      %v608 = vunpack.c.h.b16 %v300
      %v609 = vunpack.c.l.b16 %v301
      %v610 = vunpack.c.h.b16 %v301
      %v611 = vunpack.c.l.b16 %v302
      %v612 = vunpack.c.h.b16 %v302
      %v613 = vunpack.c.l.b16 %v303
      %v614 = vunpack.c.h.b16 %v303
      %v615 = vunpack.c.l.b16 %v304
      %v616 = vunpack.c.h.b16 %v304
      %v617 = vunpack.c.l.b16 %v305
      %v618 = vunpack.c.h.b16 %v305
      %v619 = vunpack.c.l.b16 %v306
      %v620 = vunpack.c.h.b16 %v306
      %v621 = vunpack.c.l.b16 %v307
      %v622 = vunpack.c.h.b16 %v307
      %v623 = vunpack.c.l.b16 %v308
      %v624 = vunpack.c.h.b16 %v308
      %v625 = vunpack.c.l.b16 %v309
      %v626 = vunpack.c.h.b16 %v309
      %v627 = vunpack.c.l.b16 %v310
      %v628 = vunpack.c.h.b16 %v310
      %v629 = vunpack.c.l.b16 %v311
      %v630 = vunpack.c.h.b16 %v311
      %v631 = vunpack.c.l.b16 %v312
      %v632 = vunpack.c.h.b16 %v312
      %v633 = vunpack.c.l.b16 %v313
      %v634 = vunpack.c.h.b16 %v313
      %v635 = vunpack.c.l.b16 %v314
      %v636 = vunpack.c.h.b16 %v314
      %v637 = vunpack.c.l.b16 %v315
      %v638 = vunpack.c.h.b16 %v315
      %v639 = vunpack.c.l.b16 %v316
      %v640 = vunpack.c.h.b16 %v316
      %v641 = vunpack.c.l.b16 %v317
      %v642 = vunpack.c.h.b16 %v317
      %v643 = vunpack.c.l.b16 %v318
      %v644 = vunpack.c.h.b16 %v318
      %v645 = vunpack.c.l.b16 %v319
      %v646 = vunpack.c.h.b16 %v319
      %v647 = vunpack.c.l.b16 %v320
      %v648 = vunpack.c.h.b16 %v320
      %v649 = vunpack.c.l.b16 %v321
      %v650 = vunpack.c.h.b16 %v321
      %v651 = vunpack.c.l.b16 %v322
      %v652 = vunpack.c.h.b16 %v322
      %v653 = vunpack.c.l.b16 %v323
      %v654 = vunpack.c.h.b16 %v323
      %v655 = vunpack.c.l.b16 %v324
      %v656 = vunpack.c.h.b16 %v324
      %v657 = vunpack.c.l.b16 %v325
      %v658 = vunpack.c.h.b16 %v325
      %v659 = vunpack.c.l.b16 %v326
      %v660 = vunpack.c.h.b16 %v326
      %v661 = vunpack.c.l.b16 %v327
      %v662 = vunpack.c.h.b16 %v327
      %v663 = vunpack.c.l.b16 %v328
      %v664 = vunpack.c.h.b16 %v328
      %v665 = vunpack.c.l.b16 %v329
      %v666 = vunpack.c.h.b16 %v329
      %v667 = vunpack.c.l.b16 %v330
      %v668 = vunpack.c.h.b16 %v330
      %v669 = vunpack.c.l.b16 %v331
      %v670 = vunpack.c.h.b16 %v331
      %v671 = vpack.c.b16 %v591, %v589
      %v672 = vpack.c.b16 %v592, %v590
      %v673 = vpack.c.b16 %v595, %v593
      %v674 = vpack.c.b16 %v596, %v594
      %v675 = vpack.c.b16 %v599, %v597
      %v676 = vpack.c.b16 %v600, %v598
      %v677 = vpack.c.b16 %v603, %v601
      %v678 = vpack.c.b16 %v604, %v602
      %v679 = vpack.c.b16 %v607, %v605
      %v680 = vpack.c.b16 %v608, %v606
      %v681 = vpack.c.b16 %v611, %v609
      %v682 = vpack.c.b16 %v612, %v610
      %v683 = vpack.c.b16 %v615, %v613
      %v684 = vpack.c.b16 %v616, %v614
      %v685 = vpack.c.b16 %v619, %v617
      %v686 = vpack.c.b16 %v620, %v618
      %v687 = vpack.c.b16 %v623, %v621
      %v688 = vpack.c.b16 %v624, %v622
      %v689 = vpack.c.b16 %v627, %v625
      %v690 = vpack.c.b16 %v628, %v626
      %v691 = vpack.c.b16 %v631, %v629
      %v692 = vpack.c.b16 %v632, %v630
      %v693 = vpack.c.b16 %v635, %v633
      %v694 = vpack.c.b16 %v636, %v634
      %v695 = vpack.c.b16 %v639, %v637
      %v696 = vpack.c.b16 %v640, %v638
      %v697 = vpack.c.b16 %v643, %v641
      %v698 = vpack.c.b16 %v644, %v642
      %v699 = vpack.c.b16 %v647, %v645
      %v700 = vpack.c.b16 %v648, %v646
      %v701 = vpack.c.b16 %v651, %v649
      %v702 = vpack.c.b16 %v652, %v650
      %v703 = vpack.c.b16 %v655, %v653
      %v704 = vpack.c.b16 %v656, %v654
      %v705 = vpack.c.b16 %v659, %v657
      %v706 = vpack.c.b16 %v660, %v658
      %v707 = vpack.c.b16 %v663, %v661
      %v708 = vpack.c.b16 %v664, %v662
      %v709 = vpack.c.b16 %v667, %v665
      %v710 = vpack.c.b16 %v668, %v666
      %v711 = vpack.c.b16 %v669, %v669
      %v712 = vpack.c.b16 %v670, %v670
      %vm753 = vcmask 556032
      %v755 = vsel %vm753, %v510, 0
      %v758 = vsel %vm753, %v513, 0
      %v761 = vsel %vm753, %v516, 0
      %v764 = vsel %vm753, %v519, 0
      %v767 = vsel %vm753, %v522, 0
      %v770 = vsel %vm753, %v525, 0
      %v773 = vsel %vm753, %v528, 0
      %v776 = vsel %vm753, %v531, 0
      %vm778 = vcmask 1041408
      %v780 = vsel %vm778, %v711, 0
      %v783 = vsel %vm778, %v712, 0
      %785 = vmatprep.subr.bf16.mxu0 %v686
      %786 = vmatpush1.bf16.msra.mxu0 %v685
      %787 = vmatprep.subr.bf16.mxu0 %v684
      %788 = vmatpush1.bf16.msra.mxu0 %v683
      %789 = vmatprep.subr.bf16.mxu0 %v682
      %790 = vmatpush1.bf16.msra.mxu0 %v681
      %791 = vmatprep.subr.bf16.mxu0 %v680
      %792 = vmatpush1.bf16.msra.mxu0 %v679
      %793 = vmatprep.subr.bf16.mxu0 %v678
      %794 = vmatpush1.bf16.msra.mxu0 %v677
      %795 = vmatprep.subr.bf16.mxu0 %v676
      %796 = vmatpush1.bf16.msra.mxu0 %v675
      %797 = vmatprep.subr.bf16.mxu0 %v674
      %798 = vmatpush1.bf16.msra.mxu0 %v673
      %799 = vmatprep.subr.bf16.mxu0 %v672
      %800 = vmatpush1.bf16.msra.mxu0 %v671
      %801 = vmatprep.subr.bf16.mxu0 %v702
      %802 = vmatpush2.bf16.msra.mxu0 %v701
      %803 = vmatprep.subr.bf16.mxu0 %v700
      %804 = vmatpush2.bf16.msra.mxu0 %v699
      %805 = vmatprep.subr.bf16.mxu0 %v698
      %806 = vmatpush2.bf16.msra.mxu0 %v697
      %807 = vmatprep.subr.bf16.mxu0 %v696
      %808 = vmatpush2.bf16.msra.mxu0 %v695
      %809 = vmatprep.subr.bf16.mxu0 %v694
      %810 = vmatpush2.bf16.msra.mxu0 %v693
      %811 = vmatprep.subr.bf16.mxu0 %v692
      %812 = vmatpush2.bf16.msra.mxu0 %v691
      %813 = vmatprep.subr.bf16.mxu0 %v690
      %814 = vmatpush2.bf16.msra.mxu0 %v689
      %815 = vmatprep.subr.bf16.mxu0 %v688
      %816 = vmatpush2.bf16.msra.mxu0 %v687
      %817 = vmatprep.mubr.bf16.mxu0 %v509
      %818 = vmatmul.mubr.bf16.gmra.mxu0 %v508
      %v819 = vpop.f32.mrf.mxu0
      %v820 = vadd.f32 %v351, %v819
      %v821 = vpop.f32.mrf.mxu0
      %v822 = vadd.f32 %v351, %v821
      %v823 = vpop.f32.mrf.mxu0
      %v824 = vadd.f32 %v356, %v823
      %v825 = vpop.f32.mrf.mxu0
      %v826 = vadd.f32 %v356, %v825
      %827 = vmatprep.mubr.bf16.mxu0 %v512
      %828 = vmatmul.mubr.bf16.gmra.mxu0 %v511
      %v829 = vpop.f32.mrf.mxu0
      %v830 = vadd.f32 %v361, %v829
      %v831 = vpop.f32.mrf.mxu0
      %v832 = vadd.f32 %v361, %v831
      %v833 = vpop.f32.mrf.mxu0
      %v834 = vadd.f32 %v366, %v833
      %v835 = vpop.f32.mrf.mxu0
      %v836 = vadd.f32 %v366, %v835
      %837 = vmatprep.mubr.bf16.mxu0 %v515
      %838 = vmatmul.mubr.bf16.gmra.mxu0 %v514
      %v839 = vpop.f32.mrf.mxu0
      %v840 = vadd.f32 %v371, %v839
      %v841 = vpop.f32.mrf.mxu0
      %v842 = vadd.f32 %v371, %v841
      %v843 = vpop.f32.mrf.mxu0
      %v844 = vadd.f32 %v376, %v843
      %v845 = vpop.f32.mrf.mxu0
      %v846 = vadd.f32 %v376, %v845
      %847 = vmatprep.mubr.bf16.mxu0 %v518
      %848 = vmatmul.mubr.bf16.gmra.mxu0 %v517
      %v849 = vpop.f32.mrf.mxu0
      %v850 = vadd.f32 %v381, %v849
      %v851 = vpop.f32.mrf.mxu0
      %v852 = vadd.f32 %v381, %v851
      %v853 = vpop.f32.mrf.mxu0
      %v854 = vadd.f32 %v386, %v853
      %v855 = vpop.f32.mrf.mxu0
      %v856 = vadd.f32 %v386, %v855
      %857 = vmatprep.mubr.bf16.mxu0 %v521
      %858 = vmatmul.mubr.bf16.gmra.mxu0 %v520
      %v859 = vpop.f32.mrf.mxu0
      %v860 = vadd.f32 %v391, %v859
      %v861 = vpop.f32.mrf.mxu0
      %v862 = vadd.f32 %v391, %v861
      %v863 = vpop.f32.mrf.mxu0
      %v864 = vadd.f32 %v396, %v863
      %v865 = vpop.f32.mrf.mxu0
      %v866 = vadd.f32 %v396, %v865
      %867 = vmatprep.mubr.bf16.mxu0 %v524
      %868 = vmatmul.mubr.bf16.gmra.mxu0 %v523
      %v869 = vpop.f32.mrf.mxu0
      %v870 = vadd.f32 %v401, %v869
      %v871 = vpop.f32.mrf.mxu0
      %v872 = vadd.f32 %v401, %v871
      %v873 = vpop.f32.mrf.mxu0
      %v874 = vadd.f32 %v406, %v873
      %v875 = vpop.f32.mrf.mxu0
      %v876 = vadd.f32 %v406, %v875
      %877 = vmatprep.mubr.bf16.mxu0 %v527
      %878 = vmatmul.mubr.bf16.gmra.mxu0 %v526
      %v879 = vpop.f32.mrf.mxu0
      %v880 = vadd.f32 %v411, %v879
      %v881 = vpop.f32.mrf.mxu0
      %v882 = vadd.f32 %v411, %v881
      %v883 = vpop.f32.mrf.mxu0
      %v884 = vadd.f32 %v416, %v883
      %v885 = vpop.f32.mrf.mxu0
      %v886 = vadd.f32 %v416, %v885
      %887 = vmatprep.mubr.bf16.mxu0 %v530
      %888 = vmatmul.mubr.bf16.gmra.mxu0 %v529
      %v889 = vpop.f32.mrf.mxu0
      %v890 = vadd.f32 %v421, %v889
      %v891 = vpop.f32.mrf.mxu0
      %v892 = vadd.f32 %v421, %v891
      %v893 = vpop.f32.mrf.mxu0
      %v894 = vadd.f32 %v426, %v893
      %v895 = vpop.f32.mrf.mxu0
      %v896 = vadd.f32 %v426, %v895
      %897 = vdwg.mxu0
      %898 = vmatprep.subr.bf16.mxu0 0
      %899 = vmatpush1.bf16.msra.mxu0 0
      %900 = vmatprep.subr.bf16.mxu0 0
      %901 = vmatpush1.bf16.msra.mxu0 0
      %902 = vmatprep.subr.bf16.mxu0 0
      %903 = vmatpush1.bf16.msra.mxu0 0
      %904 = vmatprep.subr.bf16.mxu0 %v783
      %905 = vmatpush1.bf16.msra.mxu0 %v780
      %906 = vmatprep.subr.bf16.mxu0 %v710
      %907 = vmatpush1.bf16.msra.mxu0 %v709
      %908 = vmatprep.subr.bf16.mxu0 %v708
      %909 = vmatpush1.bf16.msra.mxu0 %v707
      %910 = vmatprep.subr.bf16.mxu0 %v706
      %911 = vmatpush1.bf16.msra.mxu0 %v705
      %912 = vmatprep.subr.bf16.mxu0 %v704
      %913 = vmatpush1.bf16.msra.mxu0 %v703
      %914 = vmatprep.subr.bf16.mxu0 0
      %915 = vmatpush2.bf16.msra.mxu0 0
      %916 = vmatprep.subr.bf16.mxu0 0
      %917 = vmatpush2.bf16.msra.mxu0 0
      %918 = vmatprep.subr.bf16.mxu0 0
      %919 = vmatpush2.bf16.msra.mxu0 0
      %920 = vmatprep.subr.bf16.mxu0 0
      %921 = vmatpush2.bf16.msra.mxu0 0
      %922 = vmatprep.subr.bf16.mxu0 0
      %923 = vmatpush2.bf16.msra.mxu0 0
      %924 = vmatprep.subr.bf16.mxu0 0
      %925 = vmatpush2.bf16.msra.mxu0 0
      %926 = vmatprep.subr.bf16.mxu0 0
      %927 = vmatpush2.bf16.msra.mxu0 0
      %928 = vmatprep.subr.bf16.mxu0 0
      %929 = vmatpush2.bf16.msra.mxu0 0
      %930 = vmatprep.mubr.bf16.mxu0 0
      %931 = vmatmul.mubr.bf16.gmra.mxu0 %v755
      %v932 = vpop.f32.mrf.mxu0
      %v933 = vadd.f32 %v820, %v932
      %v934 = vpop.f32.mrf.mxu0
      %v935 = vadd.f32 %v822, %v934
      %v936 = vpop.f32.mrf.mxu0
      %v937 = vadd.f32 %v824, %v936
      %v938 = vpop.f32.mrf.mxu0
      %v939 = vadd.f32 %v826, %v938
      %940 = vmatprep.mubr.bf16.mxu0 0
      %941 = vmatmul.mubr.bf16.gmra.mxu0 %v758
      %v942 = vpop.f32.mrf.mxu0
      %v943 = vadd.f32 %v830, %v942
      %v944 = vpop.f32.mrf.mxu0
      %v945 = vadd.f32 %v832, %v944
      %v946 = vpop.f32.mrf.mxu0
      %v947 = vadd.f32 %v834, %v946
      %v948 = vpop.f32.mrf.mxu0
      %v949 = vadd.f32 %v836, %v948
      %950 = vmatprep.mubr.bf16.mxu0 0
      %951 = vmatmul.mubr.bf16.gmra.mxu0 %v761
      %v952 = vpop.f32.mrf.mxu0
      %v953 = vadd.f32 %v840, %v952
      %v954 = vpop.f32.mrf.mxu0
      %v955 = vadd.f32 %v842, %v954
      %v956 = vpop.f32.mrf.mxu0
      %v957 = vadd.f32 %v844, %v956
      %v958 = vpop.f32.mrf.mxu0
      %v959 = vadd.f32 %v846, %v958
      %960 = vmatprep.mubr.bf16.mxu0 0
      %961 = vmatmul.mubr.bf16.gmra.mxu0 %v764
      %v962 = vpop.f32.mrf.mxu0
      %v963 = vadd.f32 %v850, %v962
      %v964 = vpop.f32.mrf.mxu0
      %v965 = vadd.f32 %v852, %v964
      %v966 = vpop.f32.mrf.mxu0
      %v967 = vadd.f32 %v854, %v966
      %v968 = vpop.f32.mrf.mxu0
      %v969 = vadd.f32 %v856, %v968
      %970 = vmatprep.mubr.bf16.mxu0 0
      %971 = vmatmul.mubr.bf16.gmra.mxu0 %v767
      %v972 = vpop.f32.mrf.mxu0
      %v973 = vadd.f32 %v860, %v972
      %v974 = vpop.f32.mrf.mxu0
      %v975 = vadd.f32 %v862, %v974
      %v976 = vpop.f32.mrf.mxu0
      %v977 = vadd.f32 %v864, %v976
      %v978 = vpop.f32.mrf.mxu0
      %v979 = vadd.f32 %v866, %v978
      %980 = vmatprep.mubr.bf16.mxu0 0
      %981 = vmatmul.mubr.bf16.gmra.mxu0 %v770
      %v982 = vpop.f32.mrf.mxu0
      %v983 = vadd.f32 %v870, %v982
      %v984 = vpop.f32.mrf.mxu0
      %v985 = vadd.f32 %v872, %v984
      %v986 = vpop.f32.mrf.mxu0
      %v987 = vadd.f32 %v874, %v986
      %v988 = vpop.f32.mrf.mxu0
      %v989 = vadd.f32 %v876, %v988
      %990 = vmatprep.mubr.bf16.mxu0 0
      %991 = vmatmul.mubr.bf16.gmra.mxu0 %v773
      %v992 = vpop.f32.mrf.mxu0
      %v993 = vadd.f32 %v880, %v992
      %v994 = vpop.f32.mrf.mxu0
      %v995 = vadd.f32 %v882, %v994
      %v996 = vpop.f32.mrf.mxu0
      %v997 = vadd.f32 %v884, %v996
      %v998 = vpop.f32.mrf.mxu0
      %v999 = vadd.f32 %v886, %v998
      %1000 = vmatprep.mubr.bf16.mxu0 0
      %1001 = vmatmul.mubr.bf16.gmra.mxu0 %v776
      %v1002 = vpop.f32.mrf.mxu0
      %v1003 = vadd.f32 %v890, %v1002
      %v1004 = vpop.f32.mrf.mxu0
      %v1005 = vadd.f32 %v892, %v1004
      %v1006 = vpop.f32.mrf.mxu0
      %v1007 = vadd.f32 %v894, %v1006
      %v1008 = vpop.f32.mrf.mxu0
      %v1009 = vadd.f32 %v896, %v1008
      %1010 = vdwg.mxu0
      %v1011 = vxor.u32 %v933, 2147483648
      %v1012 = vxor.u32 %v935, 2147483648
      %v1013 = vxor.u32 %v937, 2147483648
      %v1014 = vxor.u32 %v939, 2147483648
      %v1015 = vxor.u32 %v943, 2147483648
      %v1016 = vxor.u32 %v945, 2147483648
      %v1017 = vxor.u32 %v947, 2147483648
      %v1018 = vxor.u32 %v949, 2147483648
      %v1019 = vmul.f32 %v1011, 1.442695
      %v1020 = vpow.pop %v1019
      %v1021 = vmul.f32 %v1012, 1.442695
      %v1022 = vpow.pop %v1021
      %v1023 = vmul.f32 %v1013, 1.442695
      %v1024 = vpow.pop %v1023
      %v1025 = vmul.f32 %v1014, 1.442695
      %v1026 = vpow.pop %v1025
      %v1027 = vmul.f32 %v1015, 1.442695
      %v1028 = vpow.pop %v1027
      %v1029 = vmul.f32 %v1016, 1.442695
      %v1030 = vpow.pop %v1029
      %v1031 = vmul.f32 %v1017, 1.442695
      %v1032 = vpow.pop %v1031
      %v1033 = vmul.f32 %v1018, 1.442695
      %v1034 = vpow.pop %v1033
      %v1035 = vadd.f32 %v1020, 1.0
      %v1036 = vadd.f32 %v1022, 1.0
      %v1037 = vadd.f32 %v1024, 1.0
      %v1038 = vadd.f32 %v1026, 1.0
      %v1039 = vadd.f32 %v1028, 1.0
      %v1040 = vadd.f32 %v1030, 1.0
      %v1041 = vadd.f32 %v1032, 1.0
      %v1042 = vadd.f32 %v1034, 1.0
      %v1043 = vrcp.pop %v1035
      %v1044 = vmul.f32 1.0, %v1043
      %v1045 = vrcp.pop %v1036
      %v1046 = vmul.f32 1.0, %v1045
      %v1047 = vrcp.pop %v1037
      %v1048 = vmul.f32 1.0, %v1047
      %v1049 = vrcp.pop %v1038
      %v1050 = vmul.f32 1.0, %v1049
      %v1051 = vrcp.pop %v1039
      %v1052 = vmul.f32 1.0, %v1051
      %v1053 = vrcp.pop %v1040
      %v1054 = vmul.f32 1.0, %v1053
      %v1055 = vrcp.pop %v1041
      %v1056 = vmul.f32 1.0, %v1055
      %v1057 = vrcp.pop %v1042
      %v1058 = vmul.f32 1.0, %v1057
      %v1059 = vxor.u32 %v953, 2147483648
      %v1060 = vxor.u32 %v955, 2147483648
      %v1061 = vxor.u32 %v957, 2147483648
      %v1062 = vxor.u32 %v959, 2147483648
      %v1063 = vxor.u32 %v963, 2147483648
      %v1064 = vxor.u32 %v965, 2147483648
      %v1065 = vxor.u32 %v967, 2147483648
      %v1066 = vxor.u32 %v969, 2147483648
      %v1067 = vmul.f32 %v1059, 1.442695
      %v1068 = vpow.pop %v1067
      %v1069 = vmul.f32 %v1060, 1.442695
      %v1070 = vpow.pop %v1069
      %v1071 = vmul.f32 %v1061, 1.442695
      %v1072 = vpow.pop %v1071
      %v1073 = vmul.f32 %v1062, 1.442695
      %v1074 = vpow.pop %v1073
      %v1075 = vmul.f32 %v1063, 1.442695
      %v1076 = vpow.pop %v1075
      %v1077 = vmul.f32 %v1064, 1.442695
      %v1078 = vpow.pop %v1077
      %v1079 = vmul.f32 %v1065, 1.442695
      %v1080 = vpow.pop %v1079
      %v1081 = vmul.f32 %v1066, 1.442695
      %v1082 = vpow.pop %v1081
      %v1083 = vadd.f32 %v1068, 1.0
      %v1084 = vadd.f32 %v1070, 1.0
      %v1085 = vadd.f32 %v1072, 1.0
      %v1086 = vadd.f32 %v1074, 1.0
      %v1087 = vadd.f32 %v1076, 1.0
      %v1088 = vadd.f32 %v1078, 1.0
      %v1089 = vadd.f32 %v1080, 1.0
      %v1090 = vadd.f32 %v1082, 1.0
      %v1091 = vrcp.pop %v1083
      %v1092 = vmul.f32 1.0, %v1091
      %v1093 = vrcp.pop %v1084
      %v1094 = vmul.f32 1.0, %v1093
      %v1095 = vrcp.pop %v1085
      %v1096 = vmul.f32 1.0, %v1095
      %v1097 = vrcp.pop %v1086
      %v1098 = vmul.f32 1.0, %v1097
      %v1099 = vrcp.pop %v1087
      %v1100 = vmul.f32 1.0, %v1099
      %v1101 = vrcp.pop %v1088
      %v1102 = vmul.f32 1.0, %v1101
      %v1103 = vrcp.pop %v1089
      %v1104 = vmul.f32 1.0, %v1103
      %v1105 = vrcp.pop %v1090
      %v1106 = vmul.f32 1.0, %v1105
      %v1107 = vxor.u32 %v973, 2147483648
      %v1108 = vxor.u32 %v975, 2147483648
      %v1109 = vxor.u32 %v977, 2147483648
      %v1110 = vxor.u32 %v979, 2147483648
      %v1111 = vxor.u32 %v983, 2147483648
      %v1112 = vxor.u32 %v985, 2147483648
      %v1113 = vxor.u32 %v987, 2147483648
      %v1114 = vxor.u32 %v989, 2147483648
      %v1115 = vmul.f32 %v1107, 1.442695
      %v1116 = vpow.pop %v1115
      %v1117 = vmul.f32 %v1108, 1.442695
      %v1118 = vpow.pop %v1117
      %v1119 = vmul.f32 %v1109, 1.442695
      %v1120 = vpow.pop %v1119
      %v1121 = vmul.f32 %v1110, 1.442695
      %v1122 = vpow.pop %v1121
      %v1123 = vmul.f32 %v1111, 1.442695
      %v1124 = vpow.pop %v1123
      %v1125 = vmul.f32 %v1112, 1.442695
      %v1126 = vpow.pop %v1125
      %v1127 = vmul.f32 %v1113, 1.442695
      %v1128 = vpow.pop %v1127
      %v1129 = vmul.f32 %v1114, 1.442695
      %v1130 = vpow.pop %v1129
      %v1131 = vadd.f32 %v1116, 1.0
      %v1132 = vadd.f32 %v1118, 1.0
      %v1133 = vadd.f32 %v1120, 1.0
      %v1134 = vadd.f32 %v1122, 1.0
      %v1135 = vadd.f32 %v1124, 1.0
      %v1136 = vadd.f32 %v1126, 1.0
      %v1137 = vadd.f32 %v1128, 1.0
      %v1138 = vadd.f32 %v1130, 1.0
      %v1139 = vrcp.pop %v1131
      %v1140 = vmul.f32 1.0, %v1139
      %v1141 = vrcp.pop %v1132
      %v1142 = vmul.f32 1.0, %v1141
      %v1143 = vrcp.pop %v1133
      %v1144 = vmul.f32 1.0, %v1143
      %v1145 = vrcp.pop %v1134
      %v1146 = vmul.f32 1.0, %v1145
      %v1147 = vrcp.pop %v1135
      %v1148 = vmul.f32 1.0, %v1147
      %v1149 = vrcp.pop %v1136
      %v1150 = vmul.f32 1.0, %v1149
      %v1151 = vrcp.pop %v1137
      %v1152 = vmul.f32 1.0, %v1151
      %v1153 = vrcp.pop %v1138
      %v1154 = vmul.f32 1.0, %v1153
      %v1155 = vtanh.pop %v993
      %v1156 = vtanh.pop %v995
      %v1157 = vtanh.pop %v997
      %v1158 = vtanh.pop %v999
      %v1159 = vtanh.pop %v1003
      %v1160 = vtanh.pop %v1005
      %v1161 = vtanh.pop %v1007
      %v1162 = vtanh.pop %v1009
      %v1163 = vld [vmem:[%s247] sm:$0xff]
      %v1164 = vld [vmem:[%s247 + $0x8] sm:$0xff]
      %v1165 = vld [vmem:[%s247 + $0x10] sm:$0xff]
      %v1166 = vld [vmem:[%s247 + $0x18] sm:$0xff]
      %v1167 = vld [vmem:[%s247 + $0x20] sm:$0xff]
      %v1168 = vld [vmem:[%s247 + $0x28] sm:$0xff]
      %v1169 = vld [vmem:[%s247 + $0x30] sm:$0xff]
      %v1170 = vld [vmem:[%s247 + $0x38] sm:$0xff]
      %v1171 = vmul.f32 %v1092, %v1163
      %v1172 = vmul.f32 %v1094, %v1164
      %v1173 = vmul.f32 %v1096, %v1165
      %v1174 = vmul.f32 %v1098, %v1166
      %v1175 = vmul.f32 %v1100, %v1167
      %v1176 = vmul.f32 %v1102, %v1168
      %v1177 = vmul.f32 %v1104, %v1169
      %v1178 = vmul.f32 %v1106, %v1170
      %v1179 = vmul.f32 %v1044, %v1155
      %v1180 = vmul.f32 %v1046, %v1156
      %v1181 = vmul.f32 %v1048, %v1157
      %v1182 = vmul.f32 %v1050, %v1158
      %v1183 = vmul.f32 %v1052, %v1159
      %v1184 = vmul.f32 %v1054, %v1160
      %v1185 = vmul.f32 %v1056, %v1161
      %v1186 = vmul.f32 %v1058, %v1162
      %v1187 = vadd.f32 %v1171, %v1179
      %v1188 = vadd.f32 %v1172, %v1180
      %v1189 = vadd.f32 %v1173, %v1181
      %v1190 = vadd.f32 %v1174, %v1182
      %v1191 = vadd.f32 %v1175, %v1183
      %v1192 = vadd.f32 %v1176, %v1184
      %v1193 = vadd.f32 %v1177, %v1185
      %v1194 = vadd.f32 %v1178, %v1186
      %v1195 = vtanh.pop %v1187
      %v1196 = vtanh.pop %v1188
      %v1197 = vtanh.pop %v1189
      %v1198 = vtanh.pop %v1190
      %v1199 = vtanh.pop %v1191
      %v1200 = vtanh.pop %v1192
      %v1201 = vtanh.pop %v1193
      %v1202 = vtanh.pop %v1194
      %v1203 = vmul.f32 %v1140, %v1195
      %v1204 = vmul.f32 %v1142, %v1196
      %v1205 = vmul.f32 %v1144, %v1197
      %v1206 = vmul.f32 %v1146, %v1198
      %v1207 = vmul.f32 %v1148, %v1199
      %v1208 = vmul.f32 %v1150, %v1200
      %v1209 = vmul.f32 %v1152, %v1201
      %v1210 = vmul.f32 %v1154, %v1202
      %1211 = vst [vmem:[%s252] sm:$0xff] %v1203
      %1212 = vst [vmem:[%s252 + $0x8] sm:$0xff] %v1204
      %1213 = vst [vmem:[%s252 + $0x10] sm:$0xff] %v1205
      %1214 = vst [vmem:[%s252 + $0x18] sm:$0xff] %v1206
      %1215 = vst [vmem:[%s252 + $0x20] sm:$0xff] %v1207
      %1216 = vst [vmem:[%s252 + $0x28] sm:$0xff] %v1208
      %1217 = vst [vmem:[%s252 + $0x30] sm:$0xff] %v1209
      %1218 = vst [vmem:[%s252 + $0x38] sm:$0xff] %v1210
      %1219 = vst [vmem:[%s257] sm:$0xff] %v1187
      %1220 = vst [vmem:[%s257 + $0x8] sm:$0xff] %v1188
      %1221 = vst [vmem:[%s257 + $0x10] sm:$0xff] %v1189
      %1222 = vst [vmem:[%s257 + $0x18] sm:$0xff] %v1190
      %1223 = vst [vmem:[%s257 + $0x20] sm:$0xff] %v1191
      %1224 = vst [vmem:[%s257 + $0x28] sm:$0xff] %v1192
      %1225 = vst [vmem:[%s257 + $0x30] sm:$0xff] %v1193
      %1226 = vst [vmem:[%s257 + $0x38] sm:$0xff] %v1194
      %p1227 = scmp.lt.s32.totalorder %s17, 1
      %s1228 = scalar_select %p1227, %s17, 1
      %s1229 = smul.addr %s1228, 8
      %s1230 = smul.addr %s1229, 8
      %s1231 = scalar_lea.vmem %s4, %s1230
      %p1232 = scmp.lt.s32.totalorder %s17, 1
      %s1233 = scalar_select %p1232, %s17, 1
      %s1234 = smul.addr %s1233, 8
      %s1235 = smul.addr %s1234, 8
      %s1236 = scalar_lea.vmem %s5, %s1235
      // Predicated region
      $region37: #{_conv_lstm_cell_impl.1} parent=35 // pred_check
        %p1237 = pneg %p129
      $region38: #{_conv_lstm_cell_impl.1} parent=35 // pred_check_branch
        %1239 = sbr.rel (%p1237) target = $region40
      $region39: #{_conv_lstm_cell_impl.1} parent=35 // pred_region
        _
      $region40: #{_conv_lstm_cell_impl.1} parent=35 // pred_fallthru
        _
      // Predicated region
      $region41: #{_conv_lstm_cell_impl.1} parent=35 // pred_check
        %p1240 = pneg %p155
      $region42: #{_conv_lstm_cell_impl.1} parent=35 // pred_check_branch
        %1242 = sbr.rel (%p1240) target = $region44
      $region43: #{_conv_lstm_cell_impl.1} parent=35 // pred_region
        _
      $region44: #{_conv_lstm_cell_impl.1} parent=35 // pred_fallthru
        _
    $region36: #{_conv_lstm_cell_impl.1} parent=5 // pred_fallthru
      _
    %p1243 = scmp.le.s32.totalorder 2, %s12
    // Predicated region
    $region45: #{_conv_lstm_cell_impl.1} parent=5 // pred_check
      %p1244 = pneg %p1243
    $region46: #{_conv_lstm_cell_impl.1} parent=5 // pred_check_branch
      %1246 = sbr.rel (%p1244) target = $region48
    $region47: #{_conv_lstm_cell_impl.1} parent=5 // pred_region
      %s1247 = ssub.s32 %s12, 2
      // Predicated region
      $region49: #{_conv_lstm_cell_impl.1} parent=47 // pred_check
        %p1248 = pneg %p135
      $region50: #{_conv_lstm_cell_impl.1} parent=47 // pred_check_branch
        %1250 = sbr.rel (%p1248) target = $region52
      $region51: #{_conv_lstm_cell_impl.1} parent=47 // pred_region
        %p1251 = scmp.lt.s32.totalorder %s18, 1
        %s1252 = scalar_select %p1251, %s18, 1
        %s1253 = smul.addr %s1252, 8
        %s1254 = smul.addr %s1253, 8
        %s1255 = scalar_lea.vmem %s4, %s1254
      $region52: #{_conv_lstm_cell_impl.1} parent=47 // pred_fallthru
        _
      // Predicated region
      $region53: #{_conv_lstm_cell_impl.1} parent=47 // pred_check
        %p1256 = pneg %p161
      $region54: #{_conv_lstm_cell_impl.1} parent=47 // pred_check_branch
        %1258 = sbr.rel (%p1256) target = $region56
      $region55: #{_conv_lstm_cell_impl.1} parent=47 // pred_region
        %p1259 = scmp.lt.s32.totalorder %s18, 1
        %s1260 = scalar_select %p1259, %s18, 1
        %s1261 = smul.addr %s1260, 8
        %s1262 = smul.addr %s1261, 8
        %s1263 = scalar_lea.vmem %s5, %s1262
      $region56: #{_conv_lstm_cell_impl.1} parent=47 // pred_fallthru
        _
    $region48: #{_conv_lstm_cell_impl.1} parent=5 // pred_fallthru
      _
  $region6: #{_conv_lstm_cell_impl.1} parent=0 // loop_footer
    %s16 = sadd.s32 1, %s12
  $region7: #{_conv_lstm_cell_impl.1} parent=0 // loop_footer_branch
    %11 = sbr.rel target = $region3
  $region8: #{_conv_lstm_cell_impl.1} parent=0 // loop_exit
    _

</llo_original>
